<compile_context>
chip_gen: v7x
topology: tpu7x:2x2x1
jax: 0.10.0
libtpu: 0.0.40
codegen_flags: <defaults>
</compile_context>

<pallas_src>
import functools

import jax
import jax.numpy as jnp
from jax.experimental import pallas as pl
from jax.experimental.pallas import tpu as pltpu


DEFAULT_TILE_B = 2048     # batch rows (lanes) per grid step: per-step overhead dominates,
                          # so use as few, as large, steps as possible
PALLAS_MIN_BATCH = 128    # below this, a plain fused XLA matmul chain beats the launch cost


def _round_up(x: int, m: int) -> int:
    return (x + m - 1) // m * m


# ----------------------------- Pallas kernel ---------------------------------

def _mlp_kernel(x_ref, w1t_ref, b1_ref, w2t_ref, b2_ref, w3r_ref, b3_ref, o_ref):
    """Fused 3-layer MLP tile, computed 'transposed' (batch on lanes, features on sublanes)."""
    x = x_ref[...]                                                        # (F, TB)
    # Layer 1: (H, F) @ (F, TB) -> (H, TB); MXU, f32 accumulate; bias/ReLU stay f32.
    h1 = jnp.dot(w1t_ref[...], x, preferred_element_type=jnp.float32) + b1_ref[...]
    h1 = jnp.maximum(h1, 0.0).astype(w2t_ref.dtype)
    # Layer 2: (H, H) @ (H, TB) -> (H, TB).
    h2 = jnp.dot(w2t_ref[...], h1, preferred_element_type=jnp.float32) + b2_ref[...]
    h2 = jnp.maximum(h2, 0.0).astype(w3r_ref.dtype)
    # Layer 3 (single output unit): one lane-dense MXU pass (1, H) @ (H, TB) -> (1, TB).
    out = jnp.dot(w3r_ref[...], h2, preferred_element_type=jnp.float32) + b3_ref[0, 0]
    o_ref[...] = out.astype(o_ref.dtype)                                  # (1, TB), dense vst


# ------------------------ one-time parameter preparation ----------------------

def prepare_params(w1, b1, w2, b2, w3, b3, *, compute_dtype=jnp.float32):
    """Pad H->128, transpose for the lane-dense layout, reshape b3, optionally cast to bf16.

    Call once at init / after each optimizer step, NOT inside the forward pass.
    Zero-padded hidden rows/cols are exact no-ops through ReLU.
    bf16 operands are fine on v5e/v6e/v7x (MXUs are bf16-native); biases stay f32 so all
    post-matmul elementwise math is f32."""
    F, H = w1.shape
    H_pad = _round_up(H, 128)
    ph = H_pad - H
    w1t = jnp.pad(w1, ((0, 0), (0, ph))).T.astype(compute_dtype)               # (H_pad, F)
    b1c = jnp.pad(jnp.reshape(b1, (1, H)), ((0, 0), (0, ph))).T.astype(jnp.float32)  # (H_pad, 1)
    w2t = jnp.pad(w2, ((0, ph), (0, ph))).T.astype(compute_dtype)              # (H_pad, H_pad)
    b2c = jnp.pad(jnp.reshape(b2, (1, H)), ((0, 0), (0, ph))).T.astype(jnp.float32)  # (H_pad, 1)
    w3r = jnp.pad(w3, ((0, ph), (0, 0))).T.astype(compute_dtype)               # (1, H_pad)
    b3s = jnp.asarray(b3, jnp.float32).reshape(1, 1)                           # scalar -> SMEM
    return (w1t, b1c, w2t, b2c, w3r, b3s)


# ------------------------------- forward --------------------------------------

@functools.partial(jax.jit, static_argnames=("tile_b",))
def value_network_forward(x, params, *, tile_b=DEFAULT_TILE_B):
    """Batched forward. x: (B, input_size) f32 (or (input_size,)) -> (B, 1) f32.

    `params` must come from prepare_params()."""
    w1t, b1c, w2t, b2c, w3r, b3s = params
    squeeze = (x.ndim == 1)
    if squeeze:                       # single-state call, mirrors PyTorch forward(state)
        x = x[None, :]
    B, F = x.shape
    H_pad = w1t.shape[0]

    # Small/eval batches: Pallas launch + DMA-setup overhead cannot be amortized.
    if B < PALLAS_MIN_BATCH:
        h1 = jnp.maximum(x @ w1t.T.astype(jnp.float32) + b1c[:, 0], 0.0)
        h2 = jnp.maximum(h1 @ w2t.T.astype(jnp.float32) + b2c[:, 0], 0.0)
        out = h2 @ w3r.T.astype(jnp.float32) + b3s[0, 0]
        return out[0] if squeeze else out

    # Grid/tile selection: as few steps as possible.  If more than one step is needed,
    # round the step count up to an even number so dimension_semantics=("parallel",)
    # keeps both v7x TensorCores busy (no effect on single-TC v5e/v6e beyond one step).
    B_pad = _round_up(B, 128)
    steps = pl.cdiv(B_pad, tile_b)
    if steps > 1 and steps % 2:
        steps += 1
    tb = _round_up(pl.cdiv(B_pad, steps), 128)      # lane-dense tile (multiple of 128)
    B_pad = steps * tb                              # exact coverage: no OOB last block

    # Lane-dense input layout: batch on the 128-lane axis, features (F=26) on sublanes.
    xT = jnp.pad(x, ((0, B_pad - B), (0, 0))).T.astype(w1t.dtype)          # (F, B_pad)

    weight_bytes = sum(a.size * a.dtype.itemsize for a in params)
    cost = pl.CostEstimate(
        flops=2 * B_pad * (F * H_pad + H_pad * H_pad + H_pad),
        transcendentals=0,
        bytes_accessed=xT.size * xT.dtype.itemsize + B_pad * 4 + weight_bytes,
    )

    out = pl.pallas_call(
        _mlp_kernel,
        out_shape=jax.ShapeDtypeStruct((1, B_pad), jnp.float32),
        grid=(steps,),
        in_specs=[
            pl.BlockSpec((F, tb), lambda i: (0, i)),            # x: streamed, lane-dense
            pl.BlockSpec((H_pad, F), lambda i: (0, 0)),         # W1^T: VMEM-resident
            pl.BlockSpec((H_pad, 1), lambda i: (0, 0)),         # b1
            pl.BlockSpec((H_pad, H_pad), lambda i: (0, 0)),     # W2^T
            pl.BlockSpec((H_pad, 1), lambda i: (0, 0)),         # b2
            pl.BlockSpec((1, H_pad), lambda i: (0, 0)),         # w3 as a lane-major row
            pl.BlockSpec(memory_space=pltpu.MemorySpace.SMEM),  # b3 scalar
        ],
        out_specs=pl.BlockSpec((1, tb), lambda i: (0, i)),      # lane-dense output tile
        compiler_params=pltpu.CompilerParams(
            dimension_semantics=("parallel",),                  # megacore on v7x
            vmem_limit_bytes=8 * 1024 * 1024,                   # actual footprint < ~4 MiB
        ),
        cost_estimate=cost,
    )(xT, w1t, b1c, w2t, b2c, w3r, b3s)

    out = out[0, :B, None]                                      # (B, 1)
    return out[0] if squeeze else out


# ------------------------- deterministic parameter init ----------------------

def init_params(key, num_nodes=20, num_stations=5, hidden_size=64):
    """PyTorch nn.Linear-style init: U(-1/sqrt(fan_in), 1/sqrt(fan_in)).

    Weights are stored (in_features, out_features) so the math is x @ W + b
    (equivalent to PyTorch's x @ W.T with W of shape (out, in))."""
    input_size = num_nodes + num_stations + 1
    dims = [(input_size, hidden_size), (hidden_size, hidden_size), (hidden_size, 1)]
    params = []
    for fan_in, fan_out in dims:
        key, kw, kb = jax.random.split(key, 3)
        bound = 1.0 / jnp.sqrt(fan_in)
        w = jax.random.uniform(kw, (fan_in, fan_out), jnp.float32, -bound, bound)
        b = jax.random.uniform(kb, (fan_out,), jnp.float32, -bound, bound)
        params += [w, b]
    return input_size, params


# ------------------------------------ demo -----------------------------------

if __name__ == "__main__":
    num_nodes, num_stations, hidden = 20, 5, 64
    input_size, raw = init_params(jax.random.PRNGKey(0), num_nodes, num_stations, hidden)
    w1, b1, w2, b2, w3, b3 = raw

    # Synthetic preprocessed states: encoding (num_nodes+num_stations) + normalized battery,
    # a training-sized batch (mirrors train_step's stacked X).
    kx, kb = jax.random.split(jax.random.PRNGKey(0), 2)
    B = 384
    encodings = jax.random.normal(kx, (B, num_nodes + num_stations), jnp.float32)
    battery = jax.random.uniform(kb, (B, 1), jnp.float32)
    x = jnp.concatenate([encodings, battery], axis=-1)           # (384, 26)

    def ref(xb):
        h1 = jnp.maximum(xb @ w1 + b1, 0.0)
        h2 = jnp.maximum(h1 @ w2 + b2, 0.0)
        return h2 @ w3 + b3

    # One-time layout prep (pad/transpose/cast) -- done outside the forward.
    params_f32 = prepare_params(w1, b1, w2, b2, w3, b3)                       # f32 operands
    params_bf16 = prepare_params(w1, b1, w2, b2, w3, b3, compute_dtype=jnp.bfloat16)

    # (1) Training-batch forward: default tiling -> single resident lane-dense tile.
    out = value_network_forward(x, params_f32)
    jax.block_until_ready(out)
    assert out.shape == (B, 1)
    assert jnp.allclose(out, ref(x), atol=1e-4, rtol=1e-5)

    # (2) Forced small tile -> multi-step (even) grid; exercises the streaming pipeline
    #     and the v7x 2-TensorCore parallel path.
    out_multi = value_network_forward(x, params_f32, tile_b=128)              # grid = (4,)
    jax.block_until_ready(out_multi)
    assert jnp.allclose(out_multi, ref(x), atol=1e-4, rtol=1e-5)

    # (3) bf16 operand path (valid on v5e/v6e/v7x): bf16 MXU inputs, f32 accumulation.
    out_bf16 = value_network_forward(x, params_bf16)
    jax.block_until_ready(out_bf16)
    assert jnp.allclose(out_bf16, ref(x), atol=5e-2, rtol=5e-2)

    # (4) Single-state predict() path (B < 128) bypasses Pallas -- launch overhead dominates.
    out_single = value_network_forward(x[0], params_f32)
    jax.block_until_ready(out_single)
    assert out_single.shape == (1,)
    assert jnp.allclose(out_single, ref(x[:1])[0], atol=1e-5)

    print("KERNEL_OK")
</pallas_src>

<mosaic_0001>
module attributes {stable_mosaic.version = 11 : i64} {
  func.func @_mlp_kernel(%arg0: i32, %arg1: memref<26x384xf32, #tpu.memory_space<vmem>>, %arg2: memref<128x26xf32, #tpu.memory_space<vmem>>, %arg3: memref<128x1xf32, #tpu.memory_space<vmem>>, %arg4: memref<128x128xf32, #tpu.memory_space<vmem>>, %arg5: memref<128x1xf32, #tpu.memory_space<vmem>>, %arg6: memref<1x128xf32, #tpu.memory_space<vmem>>, %arg7: memref<1x1xf32, #tpu.memory_space<smem>>, %arg8: memref<1x384xf32, #tpu.memory_space<vmem>>) attributes {dimension_semantics = [#tpu.dimension_semantics<parallel>], iteration_bounds = array<i64: 1>, scalar_prefetch = 0 : i64, scratch_operands = 0 : i64, tpu.core_type = #tpu.core_type<tc>, window_params = [{transform_indices = @transform_0, window_bounds = array<i64: 26, 384>}, {pipeline_mode = #tpu.pipeline_mode<synchronous>, transform_indices = @transform_1, window_bounds = array<i64: 128, 26>}, {pipeline_mode = #tpu.pipeline_mode<synchronous>, transform_indices = @transform_2, window_bounds = array<i64: 128, 1>}, {pipeline_mode = #tpu.pipeline_mode<synchronous>, transform_indices = @transform_3, window_bounds = array<i64: 128, 128>}, {pipeline_mode = #tpu.pipeline_mode<synchronous>, transform_indices = @transform_4, window_bounds = array<i64: 128, 1>}, {pipeline_mode = #tpu.pipeline_mode<synchronous>, transform_indices = @transform_5, window_bounds = array<i64: 1, 128>}, {transform_indices = @transform_6, window_bounds = array<i64: 1, 1>}, {transform_indices = @transform_7, window_bounds = array<i64: 1, 384>}]} {
    %c0 = arith.constant 0 : index
    %c0_0 = arith.constant 0 : index
    %0 = vector.load %arg1[%c0, %c0_0] : memref<26x384xf32, #tpu.memory_space<vmem>>, vector<26x384xf32>
    %c0_1 = arith.constant 0 : index
    %c0_2 = arith.constant 0 : index
    %1 = vector.load %arg2[%c0_1, %c0_2] : memref<128x26xf32, #tpu.memory_space<vmem>>, vector<128x26xf32>
    %cst = arith.constant dense<0.000000e+00> : vector<128x384xf32>
    %2 = tpu.matmul %1, %0, %cst {dimension_numbers = #tpu.dot_dimension_numbers<[1], [0], [0], [1], [0, 0, 1, 1], [], []>} : vector<128x26xf32>, vector<26x384xf32>, vector<128x384xf32> -> vector<128x384xf32>
    %c0_3 = arith.constant 0 : index
    %c0_4 = arith.constant 0 : index
    %3 = vector.load %arg3[%c0_3, %c0_4] : memref<128x1xf32, #tpu.memory_space<vmem>>, vector<128x1xf32>
    %4 = vector.broadcast %3 : vector<128x1xf32> to vector<128x384xf32>
    %5 = arith.addf %2, %4 : vector<128x384xf32>
    %cst_5 = arith.constant 0.000000e+00 : f32
    %6 = vector.broadcast %cst_5 : f32 to vector<128x384xf32>
    %7 = arith.maximumf %5, %6 : vector<128x384xf32>
    %c0_6 = arith.constant 0 : index
    %c0_7 = arith.constant 0 : index
    %8 = vector.load %arg4[%c0_6, %c0_7] : memref<128x128xf32, #tpu.memory_space<vmem>>, vector<128x128xf32>
    %cst_8 = arith.constant dense<0.000000e+00> : vector<128x384xf32>
    %9 = tpu.matmul %8, %7, %cst_8 {dimension_numbers = #tpu.dot_dimension_numbers<[1], [0], [0], [1], [0, 0, 1, 1], [], []>} : vector<128x128xf32>, vector<128x384xf32>, vector<128x384xf32> -> vector<128x384xf32>
    %c0_9 = arith.constant 0 : index
    %c0_10 = arith.constant 0 : index
    %10 = vector.load %arg5[%c0_9, %c0_10] : memref<128x1xf32, #tpu.memory_space<vmem>>, vector<128x1xf32>
    %11 = vector.broadcast %10 : vector<128x1xf32> to vector<128x384xf32>
    %12 = arith.addf %9, %11 : vector<128x384xf32>
    %cst_11 = arith.constant 0.000000e+00 : f32
    %13 = vector.broadcast %cst_11 : f32 to vector<128x384xf32>
    %14 = arith.maximumf %12, %13 : vector<128x384xf32>
    %c0_12 = arith.constant 0 : index
    %c0_13 = arith.constant 0 : index
    %15 = vector.load %arg6[%c0_12, %c0_13] : memref<1x128xf32, #tpu.memory_space<vmem>>, vector<1x128xf32>
    %cst_14 = arith.constant dense<0.000000e+00> : vector<1x384xf32>
    %16 = tpu.matmul %15, %14, %cst_14 {dimension_numbers = #tpu.dot_dimension_numbers<[1], [0], [0], [1], [0, 0, 1, 1], [], []>} : vector<1x128xf32>, vector<128x384xf32>, vector<1x384xf32> -> vector<1x384xf32>
    %c0_15 = arith.constant 0 : index
    %c0_16 = arith.constant 0 : index
    %17 = memref.load %arg7[%c0_15, %c0_16] : memref<1x1xf32, #tpu.memory_space<smem>>
    %18 = vector.broadcast %17 : f32 to vector<1x384xf32>
    %19 = arith.addf %16, %18 : vector<1x384xf32>
    %c0_17 = arith.constant 0 : index
    %c0_18 = arith.constant 0 : index
    %20 = vector.load %arg8[%c0_17, %c0_18] : memref<1x384xf32, #tpu.memory_space<vmem>>, vector<1x384xf32>
    tpu.vector_store %arg8[%c0_17, %c0_18], %19 {strides = array<i32>} : memref<1x384xf32, #tpu.memory_space<vmem>>, vector<1x384xf32>,
    return
  }
  func.func @transform_0(%arg0: i32) -> (i32, i32) {
    %c0_i32 = arith.constant 0 : i32
    %c0_i32_0 = arith.constant 0 : i32
    return %c0_i32, %arg0 : i32, i32
  }
  func.func @transform_1(%arg0: i32) -> (i32, i32) {
    %c0_i32 = arith.constant 0 : i32
    %c0_i32_0 = arith.constant 0 : i32
    %c0_i32_1 = arith.constant 0 : i32
    return %c0_i32, %c0_i32_0 : i32, i32
  }
  func.func @transform_2(%arg0: i32) -> (i32, i32) {
    %c0_i32 = arith.constant 0 : i32
    %c0_i32_0 = arith.constant 0 : i32
    %c0_i32_1 = arith.constant 0 : i32
    return %c0_i32, %c0_i32_0 : i32, i32
  }
  func.func @transform_3(%arg0: i32) -> (i32, i32) {
    %c0_i32 = arith.constant 0 : i32
    %c0_i32_0 = arith.constant 0 : i32
    %c0_i32_1 = arith.constant 0 : i32
    return %c0_i32, %c0_i32_0 : i32, i32
  }
  func.func @transform_4(%arg0: i32) -> (i32, i32) {
    %c0_i32 = arith.constant 0 : i32
    %c0_i32_0 = arith.constant 0 : i32
    %c0_i32_1 = arith.constant 0 : i32
    return %c0_i32, %c0_i32_0 : i32, i32
  }
  func.func @transform_5(%arg0: i32) -> (i32, i32) {
    %c0_i32 = arith.constant 0 : i32
    %c0_i32_0 = arith.constant 0 : i32
    %c0_i32_1 = arith.constant 0 : i32
    return %c0_i32, %c0_i32_0 : i32, i32
  }
  func.func @transform_6(%arg0: i32) -> (i32, i32) {
    %c0_i32 = arith.constant 0 : i32
    %c0_i32_0 = arith.constant 0 : i32
    %c0_i32_1 = arith.constant 0 : i32
    return %c0_i32, %c0_i32_0 : i32, i32
  }
  func.func @transform_7(%arg0: i32) -> (i32, i32) {
    %c0_i32 = arith.constant 0 : i32
    %c0_i32_0 = arith.constant 0 : i32
    return %c0_i32, %arg0 : i32, i32
  }
}

</mosaic_0001>

<llo_original>
// kernel: value_network_forward.1
$region0: #{value_network_forward.1}
  #allocation0 [shape = 'u32[]', space=smem, size = 0x4, offset = 0x4, fixed_abs, tag = 'smem constant byte address 0x4 - core index']
  #allocation1 [shape = 'u32[144,128]{1,0:T(1,128)}', space=vmem, size = 0x12000, scoped, tag = 'internal scratch']
  #allocation2 [shape = 'f32[1,1]{1,0:T(1,128)S(6)}', space=smem, size = 0x200, scoped, tag = 'scoped memory for value_network_forward.1']
  %s0 = inlined_call_operand.vmem [shape: f32[26,384], index: 0, kind: input, shape index: {}]
  %s1 = inlined_call_operand.vmem [shape: f32[128,26], index: 1, kind: input, shape index: {}]
  %s2 = inlined_call_operand.vmem [shape: f32[128,1], index: 2, kind: input, shape index: {}]
  %s3 = inlined_call_operand.vmem [shape: f32[128,128], index: 3, kind: input, shape index: {}]
  %s4 = inlined_call_operand.vmem [shape: f32[128,1], index: 4, kind: input, shape index: {}]
  %s5 = inlined_call_operand.vmem [shape: f32[1,128], index: 5, kind: input, shape index: {}]
  %s6 = inlined_call_operand.<no memory space> [shape: f32[1,1], index: 6, kind: input, shape index: {}]
  %s7 = inlined_call_operand.hbm [shape: f32[1,384], index: 7, kind: output, shape index: {}]
  %s8 = sld [smem:[#allocation0]]
  $region38: #{value_network_forward.1} parent=0
    _
  %s10 = ssub.s32 1, %s8
  %s11 = scalar_select 0, %s10, %s8
  %12 = sst [smem:[#allocation2]] %s6
  $region1: #{value_network_forward.1} parent=0
    #allocation3 [shape = 'u8[1536]{0}', space=vmem, size = 0x800, scoped, tag = 'output window, operand 0, single buffered']
    #allocation4 [shape = 's32[1]{0}', space=sflag, size = 0x4, scoped, tag = 'scoped memory for value_network_forward.1']
    %13 = vsyncpa [#allocation4], 0
    // Predicated region
    $region2: #{value_network_forward.1} parent=1 // pred_check
      _
    $region3: #{value_network_forward.1} parent=1 // pred_check_branch
      %15 = sbr.rel (0) target = $region5
    $region4: #{value_network_forward.1} parent=1 // pred_region
      _
    $region5: #{value_network_forward.1} parent=1 // pred_fallthru
      _
    // Predicated region
    $region6: #{value_network_forward.1} parent=1 // pred_check
      _
    $region7: #{value_network_forward.1} parent=1 // pred_check_branch
      %17 = sbr.rel (0) target = $region9
    $region8: #{value_network_forward.1} parent=1 // pred_region
      _
    $region9: #{value_network_forward.1} parent=1 // pred_fallthru
      _
    // Predicated region
    $region10: #{value_network_forward.1} parent=1 // pred_check
      _
    $region11: #{value_network_forward.1} parent=1 // pred_check_branch
      %19 = sbr.rel (0) target = $region13
    $region12: #{value_network_forward.1} parent=1 // pred_region
      _
    $region13: #{value_network_forward.1} parent=1 // pred_fallthru
      _
    // Predicated region
    $region14: #{value_network_forward.1} parent=1 // pred_check
      _
    $region15: #{value_network_forward.1} parent=1 // pred_check_branch
      %21 = sbr.rel (0) target = $region17
    $region16: #{value_network_forward.1} parent=1 // pred_region
      _
    $region17: #{value_network_forward.1} parent=1 // pred_fallthru
      _
    // Predicated region
    $region18: #{value_network_forward.1} parent=1 // pred_check
      _
    $region19: #{value_network_forward.1} parent=1 // pred_check_branch
      %23 = sbr.rel (0) target = $region21
    $region20: #{value_network_forward.1} parent=1 // pred_region
      _
    $region21: #{value_network_forward.1} parent=1 // pred_fallthru
      _
    // Predicated region
    $region22: #{value_network_forward.1} parent=1 // pred_check
      _
    $region23: #{value_network_forward.1} parent=1 // pred_check_branch
      %25 = sbr.rel (0) target = $region25
    $region24: #{value_network_forward.1} parent=1 // pred_region
      _
    $region25: #{value_network_forward.1} parent=1 // pred_fallthru
      _
    // Predicated region
    $region26: #{value_network_forward.1} parent=1 // pred_check
      _
    $region27: #{value_network_forward.1} parent=1 // pred_check_branch
      %27 = sbr.rel (0) target = $region29
    $region28: #{value_network_forward.1} parent=1 // pred_region
      _
    $region29: #{value_network_forward.1} parent=1 // pred_fallthru
      _
    %v28 = vld [vmem:[%s0] sm:$0xff]
    %v29 = vld [vmem:[%s0 + $0x8] sm:$0xff]
    %v30 = vld [vmem:[%s0 + $0x10] sm:$0xff]
    %v31 = vld [vmem:[%s0 + $0x18] sm:$0xff]
    %v32 = vld [vmem:[%s0 + $0x20] sm:$0xff]
    %v33 = vld [vmem:[%s0 + $0x28] sm:$0xff]
    %v34 = vld [vmem:[%s0 + $0x30] sm:$0xff]
    %v35 = vld [vmem:[%s0 + $0x38] sm:$0xff]
    %v36 = vld [vmem:[%s0 + $0x40] sm:$0xff]
    %v37 = vld [vmem:[%s0 + $0x48] sm:$0x3]
    %v38 = vld [vmem:[%s0 + $0x50] sm:$0x3]
    %v39 = vld [vmem:[%s0 + $0x58] sm:$0x3]
    %v40 = vld [vmem:[%s1] sm:$0xff]
    %v41 = vld [vmem:[%s1 + $0x8] sm:$0xff]
    %v42 = vld [vmem:[%s1 + $0x10] sm:$0xff]
    %v43 = vld [vmem:[%s1 + $0x18] sm:$0xff]
    %v44 = vld [vmem:[%s1 + $0x20] sm:$0xff]
    %v45 = vld [vmem:[%s1 + $0x28] sm:$0xff]
    %v46 = vld [vmem:[%s1 + $0x30] sm:$0xff]
    %v47 = vld [vmem:[%s1 + $0x38] sm:$0xff]
    %v48 = vld [vmem:[%s1 + $0x40] sm:$0xff]
    %v49 = vld [vmem:[%s1 + $0x48] sm:$0xff]
    %v50 = vld [vmem:[%s1 + $0x50] sm:$0xff]
    %v51 = vld [vmem:[%s1 + $0x58] sm:$0xff]
    %v52 = vld [vmem:[%s1 + $0x60] sm:$0xff]
    %v53 = vld [vmem:[%s1 + $0x68] sm:$0xff]
    %v54 = vld [vmem:[%s1 + $0x70] sm:$0xff]
    %v55 = vld [vmem:[%s1 + $0x78] sm:$0xff]
    %v56 = vld [vmem:[%s2] sm:$0xff]
    %v57 = vld [vmem:[%s2 + $0x8] sm:$0xff]
    %v58 = vld [vmem:[%s2 + $0x10] sm:$0xff]
    %v59 = vld [vmem:[%s2 + $0x18] sm:$0xff]
    %v60 = vld [vmem:[%s2 + $0x20] sm:$0xff]
    %v61 = vld [vmem:[%s2 + $0x28] sm:$0xff]
    %v62 = vld [vmem:[%s2 + $0x30] sm:$0xff]
    %v63 = vld [vmem:[%s2 + $0x38] sm:$0xff]
    %v64 = vld [vmem:[%s2 + $0x40] sm:$0xff]
    %v65 = vld [vmem:[%s2 + $0x48] sm:$0xff]
    %v66 = vld [vmem:[%s2 + $0x50] sm:$0xff]
    %v67 = vld [vmem:[%s2 + $0x58] sm:$0xff]
    %v68 = vld [vmem:[%s2 + $0x60] sm:$0xff]
    %v69 = vld [vmem:[%s2 + $0x68] sm:$0xff]
    %v70 = vld [vmem:[%s2 + $0x70] sm:$0xff]
    %v71 = vld [vmem:[%s2 + $0x78] sm:$0xff]
    %73 = vset.pattern.permute.xlu0 0
    %74 = vperm.xlu0 %73, %v56
    %v75 = vpop.permute.xlu0 %74
    %78 = vset.pattern.permute.xlu0 0
    %79 = vperm.xlu0 %78, %v57
    %v80 = vpop.permute.xlu0 %79
    %83 = vset.pattern.permute.xlu0 0
    %84 = vperm.xlu0 %83, %v58
    %v85 = vpop.permute.xlu0 %84
    %88 = vset.pattern.permute.xlu0 0
    %89 = vperm.xlu0 %88, %v59
    %v90 = vpop.permute.xlu0 %89
    %93 = vset.pattern.permute.xlu0 0
    %94 = vperm.xlu0 %93, %v60
    %v95 = vpop.permute.xlu0 %94
    %98 = vset.pattern.permute.xlu0 0
    %99 = vperm.xlu0 %98, %v61
    %v100 = vpop.permute.xlu0 %99
    %103 = vset.pattern.permute.xlu0 0
    %104 = vperm.xlu0 %103, %v62
    %v105 = vpop.permute.xlu0 %104
    %108 = vset.pattern.permute.xlu0 0
    %109 = vperm.xlu0 %108, %v63
    %v110 = vpop.permute.xlu0 %109
    %113 = vset.pattern.permute.xlu0 0
    %114 = vperm.xlu0 %113, %v64
    %v115 = vpop.permute.xlu0 %114
    %118 = vset.pattern.permute.xlu0 0
    %119 = vperm.xlu0 %118, %v65
    %v120 = vpop.permute.xlu0 %119
    %123 = vset.pattern.permute.xlu0 0
    %124 = vperm.xlu0 %123, %v66
    %v125 = vpop.permute.xlu0 %124
    %128 = vset.pattern.permute.xlu0 0
    %129 = vperm.xlu0 %128, %v67
    %v130 = vpop.permute.xlu0 %129
    %133 = vset.pattern.permute.xlu0 0
    %134 = vperm.xlu0 %133, %v68
    %v135 = vpop.permute.xlu0 %134
    %138 = vset.pattern.permute.xlu0 0
    %139 = vperm.xlu0 %138, %v69
    %v140 = vpop.permute.xlu0 %139
    %143 = vset.pattern.permute.xlu0 0
    %144 = vperm.xlu0 %143, %v70
    %v145 = vpop.permute.xlu0 %144
    %148 = vset.pattern.permute.xlu0 0
    %149 = vperm.xlu0 %148, %v71
    %v150 = vpop.permute.xlu0 %149
    %vm152 = vcmask 211968
    %v154 = vsel %vm152, %v40, 0
    %v157 = vsel %vm152, %v41, 0
    %v160 = vsel %vm152, %v42, 0
    %v163 = vsel %vm152, %v43, 0
    %v166 = vsel %vm152, %v44, 0
    %v169 = vsel %vm152, %v45, 0
    %v172 = vsel %vm152, %v46, 0
    %v175 = vsel %vm152, %v47, 0
    %v178 = vsel %vm152, %v48, 0
    %v181 = vsel %vm152, %v49, 0
    %v184 = vsel %vm152, %v50, 0
    %v187 = vsel %vm152, %v51, 0
    %v190 = vsel %vm152, %v52, 0
    %v193 = vsel %vm152, %v53, 0
    %v196 = vsel %vm152, %v54, 0
    %v199 = vsel %vm152, %v55, 0
    %vm201 = vcmask 1041408
    %v203 = vsel %vm201, %v37, 0
    %v206 = vsel %vm201, %v38, 0
    %v209 = vsel %vm201, %v39, 0
    %211 = vmatprep.subr.mxu0 %v29
    %212 = vmatpush1.msra.mxu0 %v28
    %213 = vmatprep.subr.mxu0 %v32
    %214 = vmatpush1.msra.mxu0 %v31
    %215 = vmatprep.subr.mxu0 %v35
    %216 = vmatpush1.msra.mxu0 %v34
    %217 = vmatprep.subr.mxu0 %v206
    %218 = vmatpush1.msra.mxu0 %v203
    %219 = vmatprep.subr.mxu0 0.0
    %220 = vmatpush1.msra.mxu0 0.0
    %221 = vmatprep.subr.mxu0 0.0
    %222 = vmatpush1.msra.mxu0 0.0
    %223 = vmatprep.subr.mxu0 0.0
    %224 = vmatpush1.msra.mxu0 0.0
    %225 = vmatprep.subr.mxu0 0.0
    %226 = vmatpush1.msra.mxu0 0.0
    %227 = vmatprep.subr.mxu0 0.0
    %228 = vmatpush1.msra.mxu0 0.0
    %229 = vmatprep.subr.mxu0 0.0
    %230 = vmatpush1.msra.mxu0 0.0
    %231 = vmatprep.subr.mxu0 0.0
    %232 = vmatpush1.msra.mxu0 0.0
    %233 = vmatprep.subr.mxu0 0.0
    %234 = vmatpush1.msra.mxu0 0.0
    %235 = vmatprep.subr.mxu0 0.0
    %236 = vmatpush1.msra.mxu0 0.0
    %237 = vmatprep.subr.mxu0 0.0
    %238 = vmatpush1.msra.mxu0 0.0
    %239 = vmatprep.subr.mxu0 0.0
    %240 = vmatpush1.msra.mxu0 0.0
    %241 = vmatprep.subr.mxu0 0.0
    %242 = vmatpush1.msra.mxu0 0.0
    %243 = vmatprep.subr.mxu0 0.0
    %244 = vmatpush1.msra.mxu0 0.0
    %245 = vmatprep.subr.mxu0 0.0
    %246 = vmatpush1.msra.mxu0 0.0
    %247 = vmatprep.subr.mxu0 0.0
    %248 = vmatpush1.msra.mxu0 0.0
    %249 = vmatprep.subr.mxu0 0.0
    %250 = vmatpush1.msra.mxu0 0.0
    %251 = vmatprep.subr.mxu0 0.0
    %252 = vmatpush1.msra.mxu0 0.0
    %253 = vmatprep.subr.mxu0 0.0
    %254 = vmatpush1.msra.mxu0 0.0
    %255 = vmatprep.subr.mxu0 0.0
    %256 = vmatpush1.msra.mxu0 0.0
    %257 = vmatprep.subr.mxu0 0.0
    %258 = vmatpush1.msra.mxu0 0.0
    %259 = vmatprep.subr.mxu0 0.0
    %260 = vmatpush1.msra.mxu0 0.0
    %261 = vmatprep.subr.mxu0 0.0
    %262 = vmatpush1.msra.mxu0 0.0
    %263 = vmatprep.subr.mxu0 0.0
    %264 = vmatpush1.msra.mxu0 0.0
    %265 = vmatprep.subr.mxu0 0.0
    %266 = vmatpush1.msra.mxu0 0.0
    %267 = vmatprep.subr.mxu0 0.0
    %268 = vmatpush1.msra.mxu0 0.0
    %269 = vmatprep.subr.mxu0 0.0
    %270 = vmatpush1.msra.mxu0 0.0
    %271 = vmatprep.subr.mxu0 0.0
    %272 = vmatpush1.msra.mxu0 0.0
    %273 = vmatprep.subr.mxu0 0.0
    %274 = vmatpush1.msra.mxu0 0.0
    %275 = vmatprep.mubr.f32.mxu0 0.0
    %276 = vmatmul.mubr.f32.gmra.mrb[0].mxu0 %v154
    %v277 = vpop.f32.mrb[0].mxu0
    %v278 = vadd.f32 %v75, %v277
    %v279 = vpop.f32.mrb[0].mxu0
    %v280 = vadd.f32 %v75, %v279
    %281 = vmatprep.mubr.f32.mxu0 0.0
    %282 = vmatmul.mubr.f32.gmra.mrb[0].mxu0 %v157
    %v283 = vpop.f32.mrb[0].mxu0
    %v284 = vadd.f32 %v80, %v283
    %v285 = vpop.f32.mrb[0].mxu0
    %v286 = vadd.f32 %v80, %v285
    %287 = vmatprep.mubr.f32.mxu0 0.0
    %288 = vmatmul.mubr.f32.gmra.mrb[0].mxu0 %v160
    %v289 = vpop.f32.mrb[0].mxu0
    %v290 = vadd.f32 %v85, %v289
    %v291 = vpop.f32.mrb[0].mxu0
    %v292 = vadd.f32 %v85, %v291
    %293 = vmatprep.mubr.f32.mxu0 0.0
    %294 = vmatmul.mubr.f32.gmra.mrb[0].mxu0 %v163
    %v295 = vpop.f32.mrb[0].mxu0
    %v296 = vadd.f32 %v90, %v295
    %v297 = vpop.f32.mrb[0].mxu0
    %v298 = vadd.f32 %v90, %v297
    %299 = vmatprep.mubr.f32.mxu0 0.0
    %300 = vmatmul.mubr.f32.gmra.mrb[0].mxu0 %v166
    %v301 = vpop.f32.mrb[0].mxu0
    %v302 = vadd.f32 %v95, %v301
    %v303 = vpop.f32.mrb[0].mxu0
    %v304 = vadd.f32 %v95, %v303
    %305 = vmatprep.mubr.f32.mxu0 0.0
    %306 = vmatmul.mubr.f32.gmra.mrb[0].mxu0 %v169
    %v307 = vpop.f32.mrb[0].mxu0
    %v308 = vadd.f32 %v100, %v307
    %v309 = vpop.f32.mrb[0].mxu0
    %v310 = vadd.f32 %v100, %v309
    %311 = vmatprep.mubr.f32.mxu0 0.0
    %312 = vmatmul.mubr.f32.gmra.mrb[0].mxu0 %v172
    %v313 = vpop.f32.mrb[0].mxu0
    %v314 = vadd.f32 %v105, %v313
    %v315 = vpop.f32.mrb[0].mxu0
    %v316 = vadd.f32 %v105, %v315
    %317 = vmatprep.mubr.f32.mxu0 0.0
    %318 = vmatmul.mubr.f32.gmra.mrb[0].mxu0 %v175
    %v319 = vpop.f32.mrb[0].mxu0
    %v320 = vadd.f32 %v110, %v319
    %v321 = vpop.f32.mrb[0].mxu0
    %v322 = vadd.f32 %v110, %v321
    %323 = vmatprep.mubr.f32.mxu0 0.0
    %324 = vmatmul.mubr.f32.gmra.mrb[0].mxu0 %v178
    %v325 = vpop.f32.mrb[0].mxu0
    %v326 = vadd.f32 %v115, %v325
    %v327 = vpop.f32.mrb[0].mxu0
    %v328 = vadd.f32 %v115, %v327
    %329 = vmatprep.mubr.f32.mxu0 0.0
    %330 = vmatmul.mubr.f32.gmra.mrb[0].mxu0 %v181
    %v331 = vpop.f32.mrb[0].mxu0
    %v332 = vadd.f32 %v120, %v331
    %v333 = vpop.f32.mrb[0].mxu0
    %v334 = vadd.f32 %v120, %v333
    %335 = vmatprep.mubr.f32.mxu0 0.0
    %336 = vmatmul.mubr.f32.gmra.mrb[0].mxu0 %v184
    %v337 = vpop.f32.mrb[0].mxu0
    %v338 = vadd.f32 %v125, %v337
    %v339 = vpop.f32.mrb[0].mxu0
    %v340 = vadd.f32 %v125, %v339
    %341 = vmatprep.mubr.f32.mxu0 0.0
    %342 = vmatmul.mubr.f32.gmra.mrb[0].mxu0 %v187
    %v343 = vpop.f32.mrb[0].mxu0
    %v344 = vadd.f32 %v130, %v343
    %v345 = vpop.f32.mrb[0].mxu0
    %v346 = vadd.f32 %v130, %v345
    %347 = vmatprep.mubr.f32.mxu0 0.0
    %348 = vmatmul.mubr.f32.gmra.mrb[0].mxu0 %v190
    %v349 = vpop.f32.mrb[0].mxu0
    %v350 = vadd.f32 %v135, %v349
    %v351 = vpop.f32.mrb[0].mxu0
    %v352 = vadd.f32 %v135, %v351
    %353 = vmatprep.mubr.f32.mxu0 0.0
    %354 = vmatmul.mubr.f32.gmra.mrb[0].mxu0 %v193
    %v355 = vpop.f32.mrb[0].mxu0
    %v356 = vadd.f32 %v140, %v355
    %v357 = vpop.f32.mrb[0].mxu0
    %v358 = vadd.f32 %v140, %v357
    %359 = vmatprep.mubr.f32.mxu0 0.0
    %360 = vmatmul.mubr.f32.gmra.mrb[0].mxu0 %v196
    %v361 = vpop.f32.mrb[0].mxu0
    %v362 = vadd.f32 %v145, %v361
    %v363 = vpop.f32.mrb[0].mxu0
    %v364 = vadd.f32 %v145, %v363
    %365 = vmatprep.mubr.f32.mxu0 0.0
    %366 = vmatmul.mubr.f32.gmra.mrb[0].mxu0 %v199
    %v367 = vpop.f32.mrb[0].mxu0
    %v368 = vadd.f32 %v150, %v367
    %v369 = vpop.f32.mrb[0].mxu0
    %v370 = vadd.f32 %v150, %v369
    %371 = vdwg.mxu0
    %372 = vmatprep.subr.mxu0 0.0
    %373 = vmatpush1.msra.mxu0 %v30
    %374 = vmatprep.subr.mxu0 0.0
    %375 = vmatpush1.msra.mxu0 %v33
    %376 = vmatprep.subr.mxu0 0.0
    %377 = vmatpush1.msra.mxu0 %v36
    %378 = vmatprep.subr.mxu0 0.0
    %379 = vmatpush1.msra.mxu0 %v209
    %380 = vmatprep.subr.mxu0 0.0
    %381 = vmatpush1.msra.mxu0 0.0
    %382 = vmatprep.subr.mxu0 0.0
    %383 = vmatpush1.msra.mxu0 0.0
    %384 = vmatprep.subr.mxu0 0.0
    %385 = vmatpush1.msra.mxu0 0.0
    %386 = vmatprep.subr.mxu0 0.0
    %387 = vmatpush1.msra.mxu0 0.0
    %388 = vmatprep.subr.mxu0 0.0
    %389 = vmatpush1.msra.mxu0 0.0
    %390 = vmatprep.subr.mxu0 0.0
    %391 = vmatpush1.msra.mxu0 0.0
    %392 = vmatprep.subr.mxu0 0.0
    %393 = vmatpush1.msra.mxu0 0.0
    %394 = vmatprep.subr.mxu0 0.0
    %395 = vmatpush1.msra.mxu0 0.0
    %396 = vmatprep.subr.mxu0 0.0
    %397 = vmatpush1.msra.mxu0 0.0
    %398 = vmatprep.subr.mxu0 0.0
    %399 = vmatpush1.msra.mxu0 0.0
    %400 = vmatprep.subr.mxu0 0.0
    %401 = vmatpush1.msra.mxu0 0.0
    %402 = vmatprep.subr.mxu0 0.0
    %403 = vmatpush1.msra.mxu0 0.0
    %404 = vmatprep.subr.mxu0 0.0
    %405 = vmatpush1.msra.mxu0 0.0
    %406 = vmatprep.subr.mxu0 0.0
    %407 = vmatpush1.msra.mxu0 0.0
    %408 = vmatprep.subr.mxu0 0.0
    %409 = vmatpush1.msra.mxu0 0.0
    %410 = vmatprep.subr.mxu0 0.0
    %411 = vmatpush1.msra.mxu0 0.0
    %412 = vmatprep.subr.mxu0 0.0
    %413 = vmatpush1.msra.mxu0 0.0
    %414 = vmatprep.subr.mxu0 0.0
    %415 = vmatpush1.msra.mxu0 0.0
    %416 = vmatprep.subr.mxu0 0.0
    %417 = vmatpush1.msra.mxu0 0.0
    %418 = vmatprep.subr.mxu0 0.0
    %419 = vmatpush1.msra.mxu0 0.0
    %420 = vmatprep.subr.mxu0 0.0
    %421 = vmatpush1.msra.mxu0 0.0
    %422 = vmatprep.subr.mxu0 0.0
    %423 = vmatpush1.msra.mxu0 0.0
    %424 = vmatprep.subr.mxu0 0.0
    %425 = vmatpush1.msra.mxu0 0.0
    %426 = vmatprep.subr.mxu0 0.0
    %427 = vmatpush1.msra.mxu0 0.0
    %428 = vmatprep.subr.mxu0 0.0
    %429 = vmatpush1.msra.mxu0 0.0
    %430 = vmatprep.subr.mxu0 0.0
    %431 = vmatpush1.msra.mxu0 0.0
    %432 = vmatprep.subr.mxu0 0.0
    %433 = vmatpush1.msra.mxu0 0.0
    %434 = vmatprep.subr.mxu0 0.0
    %435 = vmatpush1.msra.mxu0 0.0
    %436 = vmatprep.mubr.f32.mxu0 0.0
    %437 = vmatmul.mubr.f32.gmra.mrb[0].mxu0 %v154
    %v438 = vpop.f32.mrb[0].mxu0
    %v439 = vadd.f32 %v75, %v438
    %v440 = vpop.f32.mrb[0].mxu0
    %441 = vmatprep.mubr.f32.mxu0 0.0
    %442 = vmatmul.mubr.f32.gmra.mrb[0].mxu0 %v157
    %v443 = vpop.f32.mrb[0].mxu0
    %v444 = vadd.f32 %v80, %v443
    %v445 = vpop.f32.mrb[0].mxu0
    %446 = vmatprep.mubr.f32.mxu0 0.0
    %447 = vmatmul.mubr.f32.gmra.mrb[0].mxu0 %v160
    %v448 = vpop.f32.mrb[0].mxu0
    %v449 = vadd.f32 %v85, %v448
    %v450 = vpop.f32.mrb[0].mxu0
    %451 = vmatprep.mubr.f32.mxu0 0.0
    %452 = vmatmul.mubr.f32.gmra.mrb[0].mxu0 %v163
    %v453 = vpop.f32.mrb[0].mxu0
    %v454 = vadd.f32 %v90, %v453
    %v455 = vpop.f32.mrb[0].mxu0
    %456 = vmatprep.mubr.f32.mxu0 0.0
    %457 = vmatmul.mubr.f32.gmra.mrb[0].mxu0 %v166
    %v458 = vpop.f32.mrb[0].mxu0
    %v459 = vadd.f32 %v95, %v458
    %v460 = vpop.f32.mrb[0].mxu0
    %461 = vmatprep.mubr.f32.mxu0 0.0
    %462 = vmatmul.mubr.f32.gmra.mrb[0].mxu0 %v169
    %v463 = vpop.f32.mrb[0].mxu0
    %v464 = vadd.f32 %v100, %v463
    %v465 = vpop.f32.mrb[0].mxu0
    %466 = vmatprep.mubr.f32.mxu0 0.0
    %467 = vmatmul.mubr.f32.gmra.mrb[0].mxu0 %v172
    %v468 = vpop.f32.mrb[0].mxu0
    %v469 = vadd.f32 %v105, %v468
    %v470 = vpop.f32.mrb[0].mxu0
    %471 = vmatprep.mubr.f32.mxu0 0.0
    %472 = vmatmul.mubr.f32.gmra.mrb[0].mxu0 %v175
    %v473 = vpop.f32.mrb[0].mxu0
    %v474 = vadd.f32 %v110, %v473
    %v475 = vpop.f32.mrb[0].mxu0
    %476 = vmatprep.mubr.f32.mxu0 0.0
    %477 = vmatmul.mubr.f32.gmra.mrb[0].mxu0 %v178
    %v478 = vpop.f32.mrb[0].mxu0
    %v479 = vadd.f32 %v115, %v478
    %v480 = vpop.f32.mrb[0].mxu0
    %481 = vmatprep.mubr.f32.mxu0 0.0
    %482 = vmatmul.mubr.f32.gmra.mrb[0].mxu0 %v181
    %v483 = vpop.f32.mrb[0].mxu0
    %v484 = vadd.f32 %v120, %v483
    %v485 = vpop.f32.mrb[0].mxu0
    %486 = vmatprep.mubr.f32.mxu0 0.0
    %487 = vmatmul.mubr.f32.gmra.mrb[0].mxu0 %v184
    %v488 = vpop.f32.mrb[0].mxu0
    %v489 = vadd.f32 %v125, %v488
    %v490 = vpop.f32.mrb[0].mxu0
    %491 = vmatprep.mubr.f32.mxu0 0.0
    %492 = vmatmul.mubr.f32.gmra.mrb[0].mxu0 %v187
    %v493 = vpop.f32.mrb[0].mxu0
    %v494 = vadd.f32 %v130, %v493
    %v495 = vpop.f32.mrb[0].mxu0
    %496 = vmatprep.mubr.f32.mxu0 0.0
    %497 = vmatmul.mubr.f32.gmra.mrb[0].mxu0 %v190
    %v498 = vpop.f32.mrb[0].mxu0
    %v499 = vadd.f32 %v135, %v498
    %v500 = vpop.f32.mrb[0].mxu0
    %501 = vmatprep.mubr.f32.mxu0 0.0
    %502 = vmatmul.mubr.f32.gmra.mrb[0].mxu0 %v193
    %v503 = vpop.f32.mrb[0].mxu0
    %v504 = vadd.f32 %v140, %v503
    %v505 = vpop.f32.mrb[0].mxu0
    %506 = vmatprep.mubr.f32.mxu0 0.0
    %507 = vmatmul.mubr.f32.gmra.mrb[0].mxu0 %v196
    %v508 = vpop.f32.mrb[0].mxu0
    %v509 = vadd.f32 %v145, %v508
    %v510 = vpop.f32.mrb[0].mxu0
    %511 = vmatprep.mubr.f32.mxu0 0.0
    %512 = vmatmul.mubr.f32.gmra.mrb[0].mxu0 %v199
    %v513 = vpop.f32.mrb[0].mxu0
    %v514 = vadd.f32 %v150, %v513
    %v515 = vpop.f32.mrb[0].mxu0
    %516 = vdwg.mxu0
    %v517 = vmax.f32 %v278, 0.0
    %v518 = vmax.f32 %v280, 0.0
    %v519 = vmax.f32 %v439, 0.0
    %v520 = vmax.f32 %v284, 0.0
    %v521 = vmax.f32 %v286, 0.0
    %v522 = vmax.f32 %v444, 0.0
    %v523 = vmax.f32 %v290, 0.0
    %v524 = vmax.f32 %v292, 0.0
    %v525 = vmax.f32 %v449, 0.0
    %v526 = vmax.f32 %v296, 0.0
    %v527 = vmax.f32 %v298, 0.0
    %v528 = vmax.f32 %v454, 0.0
    %v529 = vmax.f32 %v302, 0.0
    %v530 = vmax.f32 %v304, 0.0
    %v531 = vmax.f32 %v459, 0.0
    %v532 = vmax.f32 %v308, 0.0
    %v533 = vmax.f32 %v310, 0.0
    %v534 = vmax.f32 %v464, 0.0
    %v535 = vmax.f32 %v314, 0.0
    %v536 = vmax.f32 %v316, 0.0
    %v537 = vmax.f32 %v469, 0.0
    %v538 = vmax.f32 %v320, 0.0
    %v539 = vmax.f32 %v322, 0.0
    %v540 = vmax.f32 %v474, 0.0
    %v541 = vmax.f32 %v326, 0.0
    %v542 = vmax.f32 %v328, 0.0
    %v543 = vmax.f32 %v479, 0.0
    %v544 = vmax.f32 %v332, 0.0
    %v545 = vmax.f32 %v334, 0.0
    %v546 = vmax.f32 %v484, 0.0
    %v547 = vmax.f32 %v338, 0.0
    %v548 = vmax.f32 %v340, 0.0
    %v549 = vmax.f32 %v489, 0.0
    %v550 = vmax.f32 %v344, 0.0
    %v551 = vmax.f32 %v346, 0.0
    %v552 = vmax.f32 %v494, 0.0
    %v553 = vmax.f32 %v350, 0.0
    %v554 = vmax.f32 %v352, 0.0
    %v555 = vmax.f32 %v499, 0.0
    %v556 = vmax.f32 %v356, 0.0
    %v557 = vmax.f32 %v358, 0.0
    %v558 = vmax.f32 %v504, 0.0
    %v559 = vmax.f32 %v362, 0.0
    %v560 = vmax.f32 %v364, 0.0
    %v561 = vmax.f32 %v509, 0.0
    %v562 = vmax.f32 %v368, 0.0
    %v563 = vmax.f32 %v370, 0.0
    %v564 = vmax.f32 %v514, 0.0
    %v565 = vld [vmem:[%s3] sm:$0xff]
    %v566 = vld [vmem:[%s3 + $0x8] sm:$0xff]
    %v567 = vld [vmem:[%s3 + $0x10] sm:$0xff]
    %v568 = vld [vmem:[%s3 + $0x18] sm:$0xff]
    %v569 = vld [vmem:[%s3 + $0x20] sm:$0xff]
    %v570 = vld [vmem:[%s3 + $0x28] sm:$0xff]
    %v571 = vld [vmem:[%s3 + $0x30] sm:$0xff]
    %v572 = vld [vmem:[%s3 + $0x38] sm:$0xff]
    %v573 = vld [vmem:[%s3 + $0x40] sm:$0xff]
    %v574 = vld [vmem:[%s3 + $0x48] sm:$0xff]
    %v575 = vld [vmem:[%s3 + $0x50] sm:$0xff]
    %v576 = vld [vmem:[%s3 + $0x58] sm:$0xff]
    %v577 = vld [vmem:[%s3 + $0x60] sm:$0xff]
    %v578 = vld [vmem:[%s3 + $0x68] sm:$0xff]
    %v579 = vld [vmem:[%s3 + $0x70] sm:$0xff]
    %v580 = vld [vmem:[%s3 + $0x78] sm:$0xff]
    %v581 = vld [vmem:[%s4] sm:$0xff]
    %v582 = vld [vmem:[%s4 + $0x8] sm:$0xff]
    %v583 = vld [vmem:[%s4 + $0x10] sm:$0xff]
    %v584 = vld [vmem:[%s4 + $0x18] sm:$0xff]
    %v585 = vld [vmem:[%s4 + $0x20] sm:$0xff]
    %v586 = vld [vmem:[%s4 + $0x28] sm:$0xff]
    %v587 = vld [vmem:[%s4 + $0x30] sm:$0xff]
    %v588 = vld [vmem:[%s4 + $0x38] sm:$0xff]
    %v589 = vld [vmem:[%s4 + $0x40] sm:$0xff]
    %v590 = vld [vmem:[%s4 + $0x48] sm:$0xff]
    %v591 = vld [vmem:[%s4 + $0x50] sm:$0xff]
    %v592 = vld [vmem:[%s4 + $0x58] sm:$0xff]
    %v593 = vld [vmem:[%s4 + $0x60] sm:$0xff]
    %v594 = vld [vmem:[%s4 + $0x68] sm:$0xff]
    %v595 = vld [vmem:[%s4 + $0x70] sm:$0xff]
    %v596 = vld [vmem:[%s4 + $0x78] sm:$0xff]
    %598 = vset.pattern.permute.xlu0 0
    %599 = vperm.xlu0 %598, %v581
    %v600 = vpop.permute.xlu0 %599
    %603 = vset.pattern.permute.xlu0 0
    %604 = vperm.xlu0 %603, %v582
    %v605 = vpop.permute.xlu0 %604
    %608 = vset.pattern.permute.xlu0 0
    %609 = vperm.xlu0 %608, %v583
    %v610 = vpop.permute.xlu0 %609
    %613 = vset.pattern.permute.xlu0 0
    %614 = vperm.xlu0 %613, %v584
    %v615 = vpop.permute.xlu0 %614
    %618 = vset.pattern.permute.xlu0 0
    %619 = vperm.xlu0 %618, %v585
    %v620 = vpop.permute.xlu0 %619
    %623 = vset.pattern.permute.xlu0 0
    %624 = vperm.xlu0 %623, %v586
    %v625 = vpop.permute.xlu0 %624
    %628 = vset.pattern.permute.xlu0 0
    %629 = vperm.xlu0 %628, %v587
    %v630 = vpop.permute.xlu0 %629
    %633 = vset.pattern.permute.xlu0 0
    %634 = vperm.xlu0 %633, %v588
    %v635 = vpop.permute.xlu0 %634
    %638 = vset.pattern.permute.xlu0 0
    %639 = vperm.xlu0 %638, %v589
    %v640 = vpop.permute.xlu0 %639
    %643 = vset.pattern.permute.xlu0 0
    %644 = vperm.xlu0 %643, %v590
    %v645 = vpop.permute.xlu0 %644
    %648 = vset.pattern.permute.xlu0 0
    %649 = vperm.xlu0 %648, %v591
    %v650 = vpop.permute.xlu0 %649
    %653 = vset.pattern.permute.xlu0 0
    %654 = vperm.xlu0 %653, %v592
    %v655 = vpop.permute.xlu0 %654
    %658 = vset.pattern.permute.xlu0 0
    %659 = vperm.xlu0 %658, %v593
    %v660 = vpop.permute.xlu0 %659
    %663 = vset.pattern.permute.xlu0 0
    %664 = vperm.xlu0 %663, %v594
    %v665 = vpop.permute.xlu0 %664
    %668 = vset.pattern.permute.xlu0 0
    %669 = vperm.xlu0 %668, %v595
    %v670 = vpop.permute.xlu0 %669
    %673 = vset.pattern.permute.xlu0 0
    %674 = vperm.xlu0 %673, %v596
    %v675 = vpop.permute.xlu0 %674
    %677 = vmatprep.subr.mxu0 %v518
    %678 = vmatpush1.msra.mxu0 %v517
    %679 = vmatprep.subr.mxu0 %v521
    %680 = vmatpush1.msra.mxu0 %v520
    %681 = vmatprep.subr.mxu0 %v524
    %682 = vmatpush1.msra.mxu0 %v523
    %683 = vmatprep.subr.mxu0 %v527
    %684 = vmatpush1.msra.mxu0 %v526
    %685 = vmatprep.subr.mxu0 %v530
    %686 = vmatpush1.msra.mxu0 %v529
    %687 = vmatprep.subr.mxu0 %v533
    %688 = vmatpush1.msra.mxu0 %v532
    %689 = vmatprep.subr.mxu0 %v536
    %690 = vmatpush1.msra.mxu0 %v535
    %691 = vmatprep.subr.mxu0 %v539
    %692 = vmatpush1.msra.mxu0 %v538
    %693 = vmatprep.subr.mxu0 %v542
    %694 = vmatpush1.msra.mxu0 %v541
    %695 = vmatprep.subr.mxu0 %v545
    %696 = vmatpush1.msra.mxu0 %v544
    %697 = vmatprep.subr.mxu0 %v548
    %698 = vmatpush1.msra.mxu0 %v547
    %699 = vmatprep.subr.mxu0 %v551
    %700 = vmatpush1.msra.mxu0 %v550
    %701 = vmatprep.subr.mxu0 %v554
    %702 = vmatpush1.msra.mxu0 %v553
    %703 = vmatprep.subr.mxu0 %v557
    %704 = vmatpush1.msra.mxu0 %v556
    %705 = vmatprep.subr.mxu0 %v560
    %706 = vmatpush1.msra.mxu0 %v559
    %707 = vmatprep.subr.mxu0 %v563
    %708 = vmatpush1.msra.mxu0 %v562
    %709 = vmatprep.subr.mxu0 0.0
    %710 = vmatpush1.msra.mxu0 0.0
    %711 = vmatprep.subr.mxu0 0.0
    %712 = vmatpush1.msra.mxu0 0.0
    %713 = vmatprep.subr.mxu0 0.0
    %714 = vmatpush1.msra.mxu0 0.0
    %715 = vmatprep.subr.mxu0 0.0
    %716 = vmatpush1.msra.mxu0 0.0
    %717 = vmatprep.subr.mxu0 0.0
    %718 = vmatpush1.msra.mxu0 0.0
    %719 = vmatprep.subr.mxu0 0.0
    %720 = vmatpush1.msra.mxu0 0.0
    %721 = vmatprep.subr.mxu0 0.0
    %722 = vmatpush1.msra.mxu0 0.0
    %723 = vmatprep.subr.mxu0 0.0
    %724 = vmatpush1.msra.mxu0 0.0
    %725 = vmatprep.subr.mxu0 0.0
    %726 = vmatpush1.msra.mxu0 0.0
    %727 = vmatprep.subr.mxu0 0.0
    %728 = vmatpush1.msra.mxu0 0.0
    %729 = vmatprep.subr.mxu0 0.0
    %730 = vmatpush1.msra.mxu0 0.0
    %731 = vmatprep.subr.mxu0 0.0
    %732 = vmatpush1.msra.mxu0 0.0
    %733 = vmatprep.subr.mxu0 0.0
    %734 = vmatpush1.msra.mxu0 0.0
    %735 = vmatprep.subr.mxu0 0.0
    %736 = vmatpush1.msra.mxu0 0.0
    %737 = vmatprep.subr.mxu0 0.0
    %738 = vmatpush1.msra.mxu0 0.0
    %739 = vmatprep.subr.mxu0 0.0
    %740 = vmatpush1.msra.mxu0 0.0
    %741 = vmatprep.mubr.f32.mxu0 0.0
    %742 = vmatmul.mubr.f32.gmra.mrb[0].mxu0 %v565
    %v743 = vpop.f32.mrb[0].mxu0
    %v744 = vadd.f32 %v600, %v743
    %v745 = vpop.f32.mrb[0].mxu0
    %v746 = vadd.f32 %v600, %v745
    %747 = vmatprep.mubr.f32.mxu0 0.0
    %748 = vmatmul.mubr.f32.gmra.mrb[0].mxu0 %v566
    %v749 = vpop.f32.mrb[0].mxu0
    %v750 = vadd.f32 %v605, %v749
    %v751 = vpop.f32.mrb[0].mxu0
    %v752 = vadd.f32 %v605, %v751
    %753 = vmatprep.mubr.f32.mxu0 0.0
    %754 = vmatmul.mubr.f32.gmra.mrb[0].mxu0 %v567
    %v755 = vpop.f32.mrb[0].mxu0
    %v756 = vadd.f32 %v610, %v755
    %v757 = vpop.f32.mrb[0].mxu0
    %v758 = vadd.f32 %v610, %v757
    %759 = vmatprep.mubr.f32.mxu0 0.0
    %760 = vmatmul.mubr.f32.gmra.mrb[0].mxu0 %v568
    %v761 = vpop.f32.mrb[0].mxu0
    %v762 = vadd.f32 %v615, %v761
    %v763 = vpop.f32.mrb[0].mxu0
    %v764 = vadd.f32 %v615, %v763
    %765 = vmatprep.mubr.f32.mxu0 0.0
    %766 = vmatmul.mubr.f32.gmra.mrb[0].mxu0 %v569
    %v767 = vpop.f32.mrb[0].mxu0
    %v768 = vadd.f32 %v620, %v767
    %v769 = vpop.f32.mrb[0].mxu0
    %v770 = vadd.f32 %v620, %v769
    %771 = vmatprep.mubr.f32.mxu0 0.0
    %772 = vmatmul.mubr.f32.gmra.mrb[0].mxu0 %v570
    %v773 = vpop.f32.mrb[0].mxu0
    %v774 = vadd.f32 %v625, %v773
    %v775 = vpop.f32.mrb[0].mxu0
    %v776 = vadd.f32 %v625, %v775
    %777 = vmatprep.mubr.f32.mxu0 0.0
    %778 = vmatmul.mubr.f32.gmra.mrb[0].mxu0 %v571
    %v779 = vpop.f32.mrb[0].mxu0
    %v780 = vadd.f32 %v630, %v779
    %v781 = vpop.f32.mrb[0].mxu0
    %v782 = vadd.f32 %v630, %v781
    %783 = vmatprep.mubr.f32.mxu0 0.0
    %784 = vmatmul.mubr.f32.gmra.mrb[0].mxu0 %v572
    %v785 = vpop.f32.mrb[0].mxu0
    %v786 = vadd.f32 %v635, %v785
    %v787 = vpop.f32.mrb[0].mxu0
    %v788 = vadd.f32 %v635, %v787
    %789 = vmatprep.mubr.f32.mxu0 0.0
    %790 = vmatmul.mubr.f32.gmra.mrb[0].mxu0 %v573
    %v791 = vpop.f32.mrb[0].mxu0
    %v792 = vadd.f32 %v640, %v791
    %v793 = vpop.f32.mrb[0].mxu0
    %v794 = vadd.f32 %v640, %v793
    %795 = vmatprep.mubr.f32.mxu0 0.0
    %796 = vmatmul.mubr.f32.gmra.mrb[0].mxu0 %v574
    %v797 = vpop.f32.mrb[0].mxu0
    %v798 = vadd.f32 %v645, %v797
    %v799 = vpop.f32.mrb[0].mxu0
    %v800 = vadd.f32 %v645, %v799
    %801 = vmatprep.mubr.f32.mxu0 0.0
    %802 = vmatmul.mubr.f32.gmra.mrb[0].mxu0 %v575
    %v803 = vpop.f32.mrb[0].mxu0
    %v804 = vadd.f32 %v650, %v803
    %v805 = vpop.f32.mrb[0].mxu0
    %v806 = vadd.f32 %v650, %v805
    %807 = vmatprep.mubr.f32.mxu0 0.0
    %808 = vmatmul.mubr.f32.gmra.mrb[0].mxu0 %v576
    %v809 = vpop.f32.mrb[0].mxu0
    %v810 = vadd.f32 %v655, %v809
    %v811 = vpop.f32.mrb[0].mxu0
    %v812 = vadd.f32 %v655, %v811
    %813 = vmatprep.mubr.f32.mxu0 0.0
    %814 = vmatmul.mubr.f32.gmra.mrb[0].mxu0 %v577
    %v815 = vpop.f32.mrb[0].mxu0
    %v816 = vadd.f32 %v660, %v815
    %v817 = vpop.f32.mrb[0].mxu0
    %v818 = vadd.f32 %v660, %v817
    %819 = vmatprep.mubr.f32.mxu0 0.0
    %820 = vmatmul.mubr.f32.gmra.mrb[0].mxu0 %v578
    %v821 = vpop.f32.mrb[0].mxu0
    %v822 = vadd.f32 %v665, %v821
    %v823 = vpop.f32.mrb[0].mxu0
    %v824 = vadd.f32 %v665, %v823
    %825 = vmatprep.mubr.f32.mxu0 0.0
    %826 = vmatmul.mubr.f32.gmra.mrb[0].mxu0 %v579
    %v827 = vpop.f32.mrb[0].mxu0
    %v828 = vadd.f32 %v670, %v827
    %v829 = vpop.f32.mrb[0].mxu0
    %v830 = vadd.f32 %v670, %v829
    %831 = vmatprep.mubr.f32.mxu0 0.0
    %832 = vmatmul.mubr.f32.gmra.mrb[0].mxu0 %v580
    %v833 = vpop.f32.mrb[0].mxu0
    %v834 = vadd.f32 %v675, %v833
    %v835 = vpop.f32.mrb[0].mxu0
    %v836 = vadd.f32 %v675, %v835
    %837 = vdwg.mxu0
    %838 = vmatprep.subr.mxu0 0.0
    %839 = vmatpush1.msra.mxu0 %v519
    %840 = vmatprep.subr.mxu0 0.0
    %841 = vmatpush1.msra.mxu0 %v522
    %842 = vmatprep.subr.mxu0 0.0
    %843 = vmatpush1.msra.mxu0 %v525
    %844 = vmatprep.subr.mxu0 0.0
    %845 = vmatpush1.msra.mxu0 %v528
    %846 = vmatprep.subr.mxu0 0.0
    %847 = vmatpush1.msra.mxu0 %v531
    %848 = vmatprep.subr.mxu0 0.0
    %849 = vmatpush1.msra.mxu0 %v534
    %850 = vmatprep.subr.mxu0 0.0
    %851 = vmatpush1.msra.mxu0 %v537
    %852 = vmatprep.subr.mxu0 0.0
    %853 = vmatpush1.msra.mxu0 %v540
    %854 = vmatprep.subr.mxu0 0.0
    %855 = vmatpush1.msra.mxu0 %v543
    %856 = vmatprep.subr.mxu0 0.0
    %857 = vmatpush1.msra.mxu0 %v546
    %858 = vmatprep.subr.mxu0 0.0
    %859 = vmatpush1.msra.mxu0 %v549
    %860 = vmatprep.subr.mxu0 0.0
    %861 = vmatpush1.msra.mxu0 %v552
    %862 = vmatprep.subr.mxu0 0.0
    %863 = vmatpush1.msra.mxu0 %v555
    %864 = vmatprep.subr.mxu0 0.0
    %865 = vmatpush1.msra.mxu0 %v558
    %866 = vmatprep.subr.mxu0 0.0
    %867 = vmatpush1.msra.mxu0 %v561
    %868 = vmatprep.subr.mxu0 0.0
    %869 = vmatpush1.msra.mxu0 %v564
    %870 = vmatprep.subr.mxu0 0.0
    %871 = vmatpush1.msra.mxu0 0.0
    %872 = vmatprep.subr.mxu0 0.0
    %873 = vmatpush1.msra.mxu0 0.0
    %874 = vmatprep.subr.mxu0 0.0
    %875 = vmatpush1.msra.mxu0 0.0
    %876 = vmatprep.subr.mxu0 0.0
    %877 = vmatpush1.msra.mxu0 0.0
    %878 = vmatprep.subr.mxu0 0.0
    %879 = vmatpush1.msra.mxu0 0.0
    %880 = vmatprep.subr.mxu0 0.0
    %881 = vmatpush1.msra.mxu0 0.0
    %882 = vmatprep.subr.mxu0 0.0
    %883 = vmatpush1.msra.mxu0 0.0
    %884 = vmatprep.subr.mxu0 0.0
    %885 = vmatpush1.msra.mxu0 0.0
    %886 = vmatprep.subr.mxu0 0.0
    %887 = vmatpush1.msra.mxu0 0.0
    %888 = vmatprep.subr.mxu0 0.0
    %889 = vmatpush1.msra.mxu0 0.0
    %890 = vmatprep.subr.mxu0 0.0
    %891 = vmatpush1.msra.mxu0 0.0
    %892 = vmatprep.subr.mxu0 0.0
    %893 = vmatpush1.msra.mxu0 0.0
    %894 = vmatprep.subr.mxu0 0.0
    %895 = vmatpush1.msra.mxu0 0.0
    %896 = vmatprep.subr.mxu0 0.0
    %897 = vmatpush1.msra.mxu0 0.0
    %898 = vmatprep.subr.mxu0 0.0
    %899 = vmatpush1.msra.mxu0 0.0
    %900 = vmatprep.subr.mxu0 0.0
    %901 = vmatpush1.msra.mxu0 0.0
    %902 = vmatprep.mubr.f32.mxu0 0.0
    %903 = vmatmul.mubr.f32.gmra.mrb[0].mxu0 %v565
    %v904 = vpop.f32.mrb[0].mxu0
    %v905 = vadd.f32 %v600, %v904
    %v906 = vpop.f32.mrb[0].mxu0
    %907 = vmatprep.mubr.f32.mxu0 0.0
    %908 = vmatmul.mubr.f32.gmra.mrb[0].mxu0 %v566
    %v909 = vpop.f32.mrb[0].mxu0
    %v910 = vadd.f32 %v605, %v909
    %v911 = vpop.f32.mrb[0].mxu0
    %912 = vmatprep.mubr.f32.mxu0 0.0
    %913 = vmatmul.mubr.f32.gmra.mrb[0].mxu0 %v567
    %v914 = vpop.f32.mrb[0].mxu0
    %v915 = vadd.f32 %v610, %v914
    %v916 = vpop.f32.mrb[0].mxu0
    %917 = vmatprep.mubr.f32.mxu0 0.0
    %918 = vmatmul.mubr.f32.gmra.mrb[0].mxu0 %v568
    %v919 = vpop.f32.mrb[0].mxu0
    %v920 = vadd.f32 %v615, %v919
    %v921 = vpop.f32.mrb[0].mxu0
    %922 = vmatprep.mubr.f32.mxu0 0.0
    %923 = vmatmul.mubr.f32.gmra.mrb[0].mxu0 %v569
    %v924 = vpop.f32.mrb[0].mxu0
    %v925 = vadd.f32 %v620, %v924
    %v926 = vpop.f32.mrb[0].mxu0
    %927 = vmatprep.mubr.f32.mxu0 0.0
    %928 = vmatmul.mubr.f32.gmra.mrb[0].mxu0 %v570
    %v929 = vpop.f32.mrb[0].mxu0
    %v930 = vadd.f32 %v625, %v929
    %v931 = vpop.f32.mrb[0].mxu0
    %932 = vmatprep.mubr.f32.mxu0 0.0
    %933 = vmatmul.mubr.f32.gmra.mrb[0].mxu0 %v571
    %v934 = vpop.f32.mrb[0].mxu0
    %v935 = vadd.f32 %v630, %v934
    %v936 = vpop.f32.mrb[0].mxu0
    %937 = vmatprep.mubr.f32.mxu0 0.0
    %938 = vmatmul.mubr.f32.gmra.mrb[0].mxu0 %v572
    %v939 = vpop.f32.mrb[0].mxu0
    %v940 = vadd.f32 %v635, %v939
    %v941 = vpop.f32.mrb[0].mxu0
    %942 = vmatprep.mubr.f32.mxu0 0.0
    %943 = vmatmul.mubr.f32.gmra.mrb[0].mxu0 %v573
    %v944 = vpop.f32.mrb[0].mxu0
    %v945 = vadd.f32 %v640, %v944
    %v946 = vpop.f32.mrb[0].mxu0
    %947 = vmatprep.mubr.f32.mxu0 0.0
    %948 = vmatmul.mubr.f32.gmra.mrb[0].mxu0 %v574
    %v949 = vpop.f32.mrb[0].mxu0
    %v950 = vadd.f32 %v645, %v949
    %v951 = vpop.f32.mrb[0].mxu0
    %952 = vmatprep.mubr.f32.mxu0 0.0
    %953 = vmatmul.mubr.f32.gmra.mrb[0].mxu0 %v575
    %v954 = vpop.f32.mrb[0].mxu0
    %v955 = vadd.f32 %v650, %v954
    %v956 = vpop.f32.mrb[0].mxu0
    %957 = vmatprep.mubr.f32.mxu0 0.0
    %958 = vmatmul.mubr.f32.gmra.mrb[0].mxu0 %v576
    %v959 = vpop.f32.mrb[0].mxu0
    %v960 = vadd.f32 %v655, %v959
    %v961 = vpop.f32.mrb[0].mxu0
    %962 = vmatprep.mubr.f32.mxu0 0.0
    %963 = vmatmul.mubr.f32.gmra.mrb[0].mxu0 %v577
    %v964 = vpop.f32.mrb[0].mxu0
    %v965 = vadd.f32 %v660, %v964
    %v966 = vpop.f32.mrb[0].mxu0
    %967 = vmatprep.mubr.f32.mxu0 0.0
    %968 = vmatmul.mubr.f32.gmra.mrb[0].mxu0 %v578
    %v969 = vpop.f32.mrb[0].mxu0
    %v970 = vadd.f32 %v665, %v969
    %v971 = vpop.f32.mrb[0].mxu0
    %972 = vmatprep.mubr.f32.mxu0 0.0
    %973 = vmatmul.mubr.f32.gmra.mrb[0].mxu0 %v579
    %v974 = vpop.f32.mrb[0].mxu0
    %v975 = vadd.f32 %v670, %v974
    %v976 = vpop.f32.mrb[0].mxu0
    %977 = vmatprep.mubr.f32.mxu0 0.0
    %978 = vmatmul.mubr.f32.gmra.mrb[0].mxu0 %v580
    %v979 = vpop.f32.mrb[0].mxu0
    %v980 = vadd.f32 %v675, %v979
    %v981 = vpop.f32.mrb[0].mxu0
    %982 = vdwg.mxu0
    %v983 = vmax.f32 %v744, 0.0
    %v984 = vmax.f32 %v746, 0.0
    %v985 = vmax.f32 %v905, 0.0
    %v986 = vmax.f32 %v750, 0.0
    %v987 = vmax.f32 %v752, 0.0
    %v988 = vmax.f32 %v910, 0.0
    %v989 = vmax.f32 %v756, 0.0
    %v990 = vmax.f32 %v758, 0.0
    %v991 = vmax.f32 %v915, 0.0
    %v992 = vmax.f32 %v762, 0.0
    %v993 = vmax.f32 %v764, 0.0
    %v994 = vmax.f32 %v920, 0.0
    %v995 = vmax.f32 %v768, 0.0
    %v996 = vmax.f32 %v770, 0.0
    %v997 = vmax.f32 %v925, 0.0
    %v998 = vmax.f32 %v774, 0.0
    %v999 = vmax.f32 %v776, 0.0
    %v1000 = vmax.f32 %v930, 0.0
    %v1001 = vmax.f32 %v780, 0.0
    %v1002 = vmax.f32 %v782, 0.0
    %v1003 = vmax.f32 %v935, 0.0
    %v1004 = vmax.f32 %v786, 0.0
    %v1005 = vmax.f32 %v788, 0.0
    %v1006 = vmax.f32 %v940, 0.0
    %v1007 = vmax.f32 %v792, 0.0
    %v1008 = vmax.f32 %v794, 0.0
    %v1009 = vmax.f32 %v945, 0.0
    %v1010 = vmax.f32 %v798, 0.0
    %v1011 = vmax.f32 %v800, 0.0
    %v1012 = vmax.f32 %v950, 0.0
    %v1013 = vmax.f32 %v804, 0.0
    %v1014 = vmax.f32 %v806, 0.0
    %v1015 = vmax.f32 %v955, 0.0
    %v1016 = vmax.f32 %v810, 0.0
    %v1017 = vmax.f32 %v812, 0.0
    %v1018 = vmax.f32 %v960, 0.0
    %v1019 = vmax.f32 %v816, 0.0
    %v1020 = vmax.f32 %v818, 0.0
    %v1021 = vmax.f32 %v965, 0.0
    %v1022 = vmax.f32 %v822, 0.0
    %v1023 = vmax.f32 %v824, 0.0
    %v1024 = vmax.f32 %v970, 0.0
    %v1025 = vmax.f32 %v828, 0.0
    %v1026 = vmax.f32 %v830, 0.0
    %v1027 = vmax.f32 %v975, 0.0
    %v1028 = vmax.f32 %v834, 0.0
    %v1029 = vmax.f32 %v836, 0.0
    %v1030 = vmax.f32 %v980, 0.0
    %v1031 = vld [vmem:[%s5] sm:$0x1]
    %s1032 = sld [smem:[#allocation2]]
    %v1033 = vstv %s1032
    %1034 = vmatprep.subr.mxu0 %v984
    %1035 = vmatpush1.msra.mxu0 %v983
    %1036 = vmatprep.subr.mxu0 %v987
    %1037 = vmatpush1.msra.mxu0 %v986
    %1038 = vmatprep.subr.mxu0 %v990
    %1039 = vmatpush1.msra.mxu0 %v989
    %1040 = vmatprep.subr.mxu0 %v993
    %1041 = vmatpush1.msra.mxu0 %v992
    %1042 = vmatprep.subr.mxu0 %v996
    %1043 = vmatpush1.msra.mxu0 %v995
    %1044 = vmatprep.subr.mxu0 %v999
    %1045 = vmatpush1.msra.mxu0 %v998
    %1046 = vmatprep.subr.mxu0 %v1002
    %1047 = vmatpush1.msra.mxu0 %v1001
    %1048 = vmatprep.subr.mxu0 %v1005
    %1049 = vmatpush1.msra.mxu0 %v1004
    %1050 = vmatprep.subr.mxu0 %v1008
    %1051 = vmatpush1.msra.mxu0 %v1007
    %1052 = vmatprep.subr.mxu0 %v1011
    %1053 = vmatpush1.msra.mxu0 %v1010
    %1054 = vmatprep.subr.mxu0 %v1014
    %1055 = vmatpush1.msra.mxu0 %v1013
    %1056 = vmatprep.subr.mxu0 %v1017
    %1057 = vmatpush1.msra.mxu0 %v1016
    %1058 = vmatprep.subr.mxu0 %v1020
    %1059 = vmatpush1.msra.mxu0 %v1019
    %1060 = vmatprep.subr.mxu0 %v1023
    %1061 = vmatpush1.msra.mxu0 %v1022
    %1062 = vmatprep.subr.mxu0 %v1026
    %1063 = vmatpush1.msra.mxu0 %v1025
    %1064 = vmatprep.subr.mxu0 %v1029
    %1065 = vmatpush1.msra.mxu0 %v1028
    %1066 = vmatprep.subr.mxu0 0.0
    %1067 = vmatpush1.msra.mxu0 0.0
    %1068 = vmatprep.subr.mxu0 0.0
    %1069 = vmatpush1.msra.mxu0 0.0
    %1070 = vmatprep.subr.mxu0 0.0
    %1071 = vmatpush1.msra.mxu0 0.0
    %1072 = vmatprep.subr.mxu0 0.0
    %1073 = vmatpush1.msra.mxu0 0.0
    %1074 = vmatprep.subr.mxu0 0.0
    %1075 = vmatpush1.msra.mxu0 0.0
    %1076 = vmatprep.subr.mxu0 0.0
    %1077 = vmatpush1.msra.mxu0 0.0
    %1078 = vmatprep.subr.mxu0 0.0
    %1079 = vmatpush1.msra.mxu0 0.0
    %1080 = vmatprep.subr.mxu0 0.0
    %1081 = vmatpush1.msra.mxu0 0.0
    %1082 = vmatprep.subr.mxu0 0.0
    %1083 = vmatpush1.msra.mxu0 0.0
    %1084 = vmatprep.subr.mxu0 0.0
    %1085 = vmatpush1.msra.mxu0 0.0
    %1086 = vmatprep.subr.mxu0 0.0
    %1087 = vmatpush1.msra.mxu0 0.0
    %1088 = vmatprep.subr.mxu0 0.0
    %1089 = vmatpush1.msra.mxu0 0.0
    %1090 = vmatprep.subr.mxu0 0.0
    %1091 = vmatpush1.msra.mxu0 0.0
    %1092 = vmatprep.subr.mxu0 0.0
    %1093 = vmatpush1.msra.mxu0 0.0
    %1094 = vmatprep.subr.mxu0 0.0
    %1095 = vmatpush1.msra.mxu0 0.0
    %1096 = vmatprep.subr.mxu0 0.0
    %1097 = vmatpush1.msra.mxu0 0.0
    %1098 = vmatprep.mubr.f32.mxu0 0.0
    %1099 = vmatmul.mubr.f32.gmra.mrb[0].mxu0 %v1031
    %v1100 = vpop.f32.mrb[0].mxu0
    %v1101 = vadd.f32 %v1033, %v1100
    %v1102 = vpop.f32.mrb[0].mxu0
    %v1103 = vadd.f32 %v1033, %v1102
    %1104 = vdwg.mxu0
    %1105 = vmatprep.subr.mxu0 0.0
    %1106 = vmatpush1.msra.mxu0 %v985
    %1107 = vmatprep.subr.mxu0 0.0
    %1108 = vmatpush1.msra.mxu0 %v988
    %1109 = vmatprep.subr.mxu0 0.0
    %1110 = vmatpush1.msra.mxu0 %v991
    %1111 = vmatprep.subr.mxu0 0.0
    %1112 = vmatpush1.msra.mxu0 %v994
    %1113 = vmatprep.subr.mxu0 0.0
    %1114 = vmatpush1.msra.mxu0 %v997
    %1115 = vmatprep.subr.mxu0 0.0
    %1116 = vmatpush1.msra.mxu0 %v1000
    %1117 = vmatprep.subr.mxu0 0.0
    %1118 = vmatpush1.msra.mxu0 %v1003
    %1119 = vmatprep.subr.mxu0 0.0
    %1120 = vmatpush1.msra.mxu0 %v1006
    %1121 = vmatprep.subr.mxu0 0.0
    %1122 = vmatpush1.msra.mxu0 %v1009
    %1123 = vmatprep.subr.mxu0 0.0
    %1124 = vmatpush1.msra.mxu0 %v1012
    %1125 = vmatprep.subr.mxu0 0.0
    %1126 = vmatpush1.msra.mxu0 %v1015
    %1127 = vmatprep.subr.mxu0 0.0
    %1128 = vmatpush1.msra.mxu0 %v1018
    %1129 = vmatprep.subr.mxu0 0.0
    %1130 = vmatpush1.msra.mxu0 %v1021
    %1131 = vmatprep.subr.mxu0 0.0
    %1132 = vmatpush1.msra.mxu0 %v1024
    %1133 = vmatprep.subr.mxu0 0.0
    %1134 = vmatpush1.msra.mxu0 %v1027
    %1135 = vmatprep.subr.mxu0 0.0
    %1136 = vmatpush1.msra.mxu0 %v1030
    %1137 = vmatprep.subr.mxu0 0.0
    %1138 = vmatpush1.msra.mxu0 0.0
    %1139 = vmatprep.subr.mxu0 0.0
    %1140 = vmatpush1.msra.mxu0 0.0
    %1141 = vmatprep.subr.mxu0 0.0
    %1142 = vmatpush1.msra.mxu0 0.0
    %1143 = vmatprep.subr.mxu0 0.0
    %1144 = vmatpush1.msra.mxu0 0.0
    %1145 = vmatprep.subr.mxu0 0.0
    %1146 = vmatpush1.msra.mxu0 0.0
    %1147 = vmatprep.subr.mxu0 0.0
    %1148 = vmatpush1.msra.mxu0 0.0
    %1149 = vmatprep.subr.mxu0 0.0
    %1150 = vmatpush1.msra.mxu0 0.0
    %1151 = vmatprep.subr.mxu0 0.0
    %1152 = vmatpush1.msra.mxu0 0.0
    %1153 = vmatprep.subr.mxu0 0.0
    %1154 = vmatpush1.msra.mxu0 0.0
    %1155 = vmatprep.subr.mxu0 0.0
    %1156 = vmatpush1.msra.mxu0 0.0
    %1157 = vmatprep.subr.mxu0 0.0
    %1158 = vmatpush1.msra.mxu0 0.0
    %1159 = vmatprep.subr.mxu0 0.0
    %1160 = vmatpush1.msra.mxu0 0.0
    %1161 = vmatprep.subr.mxu0 0.0
    %1162 = vmatpush1.msra.mxu0 0.0
    %1163 = vmatprep.subr.mxu0 0.0
    %1164 = vmatpush1.msra.mxu0 0.0
    %1165 = vmatprep.subr.mxu0 0.0
    %1166 = vmatpush1.msra.mxu0 0.0
    %1167 = vmatprep.subr.mxu0 0.0
    %1168 = vmatpush1.msra.mxu0 0.0
    %1169 = vmatprep.mubr.f32.mxu0 0.0
    %1170 = vmatmul.mubr.f32.gmra.mrb[0].mxu0 %v1031
    %v1171 = vpop.f32.mrb[0].mxu0
    %v1172 = vadd.f32 %v1033, %v1171
    %v1173 = vpop.f32.mrb[0].mxu0
    %1174 = vdwg.mxu0
    %v1178 = vcombine.low %v1101, %v1103
    %v1180 = vunpack.c.l.s4 1966171168
    %v1181 = vunpack.c.0.s8 %v1180
    %v1182 = vlaneseq
    %v1183 = vshrl.u32 %v1182, 7
    %v1184 = vsub.s32 %v1181, %v1183
    %v1185 = vrot.slane %v1178, %v1184
    %v1187 = vunpack.c.l.s4 1966171168
    %v1188 = vunpack.c.0.s8 %v1187
    %v1189 = vlaneseq
    %v1190 = vshrl.u32 %v1189, 7
    %v1191 = vsub.s32 %v1188, %v1190
    %v1192 = vrot.slane %v1172, %v1191
    %v1193 = vcombine.low %v1185, %v1192
    %v1195 = vunpack.c.l.s4 1966171168
    %v1196 = vunpack.c.0.s8 %v1195
    %v1197 = vlaneseq
    %v1198 = vshrl.u32 %v1197, 7
    %v1199 = vsub.s32 %v1196, %v1198
    %v1200 = vrot.slane %v1193, %v1199
    %v1202 = vlaneseq
    %vm1203 = vcmp.ge.s32.totalorder %v1202, 0
    %vm1204 = vcmp.lt.s32.totalorder %v1202, 384
    %vm1205 = vmand %vm1203, %vm1204
    %1206 = vst.msk [vmem:[#allocation3] sm:$0x7] %vm1205, %v1200
    // Predicated region
    $region30: #{value_network_forward.1} parent=1 // pred_check
      _
    $region31: #{value_network_forward.1} parent=1 // pred_check_branch
      %1208 = sbr.rel (0) target = $region33
    $region32: #{value_network_forward.1} parent=1 // pred_region
      %s1210 = ssub.s32 48, 48
      %1211 = vsyncadd [#allocation4], %s1210
      %s1213 = sshll.u32 [#allocation3], 4
      %s1214 = int_to_ptr.vmem [resolvable:$true] %s1213
      %1216 = dma.vmem_to_hbm [thread:$0]  %s1214, 48, %s7, [#allocation4]
    $region33: #{value_network_forward.1} parent=1 // pred_fallthru
      _
    // Predicated region
    $region34: #{value_network_forward.1} parent=1 // pred_check
      _
    $region35: #{value_network_forward.1} parent=1 // pred_check_branch
      %1218 = sbr.rel (0) target = $region37
    $region36: #{value_network_forward.1} parent=1 // pred_region
      %1219 = dma.done [#allocation4], 48
    $region37: #{value_network_forward.1} parent=1 // pred_fallthru
      _
    %1220 = vsyncpa [#allocation4], 1

</llo_original>
